<compile_context>
chip_gen: v5e
topology: v5e:2x2
jax: 0.10.0
libtpu: 0.0.40
codegen_flags: <defaults>
</compile_context>

<pallas_src>
import functools

import jax
import jax.numpy as jnp
from jax.experimental import pallas as pl
from jax.experimental.pallas import tpu as pltpu


def _apl_kernel(x_ref, lbl_ref, out_ref, acc_ref, *, a_wt, p_wt):
    """One grid step processes a (tile_n, C) slab of logits + (tile_n, 1) labels.

    Per-row weighted losses accumulate in the (tile_n, 1) VMEM scratch; the
    scalar partial for this core is produced once, at the last reduction step.
    """
    i = pl.program_id(1)  # reduction axis over batch tiles (inner, "arbitrary")

    @pl.when(i == 0)
    def _():
        acc_ref[...] = jnp.zeros_like(acc_ref)

    x = x_ref[...].astype(jnp.float32)           # (tile_n, C) logits
    lbl = lbl_ref[...]                           # (tile_n, 1) int32 labels (-1 = pad)

    # true-class mask built in-kernel (no one-hot traffic from HBM)
    cls = jax.lax.broadcasted_iota(jnp.int32, x.shape, 1)    # (tile_n, C)
    is_true = cls == lbl                                     # (tile_n, C)

    # log-sum-exp path: one wide exp; narrow log/exp per row on the EUP
    m = jnp.max(x, axis=-1, keepdims=True)                   # (tile_n, 1)
    denom = jnp.sum(jnp.exp(x - m), axis=-1, keepdims=True)  # (tile_n, 1)
    x_true = jnp.sum(jnp.where(is_true, x, 0.0), axis=-1, keepdims=True)

    log_p_true = (x_true - m) - jnp.log(denom)   # stable log-softmax @ true class
    ce = -log_p_true                             # active: cross entropy
    p_true = jnp.exp(log_p_true)
    mae = 2.0 * (1.0 - p_true)                   # passive: L1(softmax, one-hot)

    valid = (lbl >= 0).astype(jnp.float32)       # mask padded rows
    acc_ref[...] += valid * (a_wt * ce + p_wt * mae)

    @pl.when(i == pl.num_programs(1) - 1)
    def _():
        # single final cross-sublane reduce; full-block (1,1,1) store
        out_ref[...] = jnp.sum(acc_ref[...]).reshape(1, 1, 1)


def _pick_tile_n(n, c, itemsize, num_cores, target_block_bytes=4 * 1024 * 1024):
    """Largest tile_n (multiple of 8) whose logits block is ~target_block_bytes,
    clamped so we never pad the batch beyond one tile per core."""
    rows_per_core = -(-n // num_cores)
    rows_per_core = -(-rows_per_core // 8) * 8
    t = max(8, (target_block_bytes // max(1, c * itemsize)) // 8 * 8)
    return max(8, min(t, rows_per_core))


def active_passive_loss(x, y, *, a_wt=1.0, p_wt=1.0, tile_n=None, num_cores=2):
    """x: [N, C] float logits (f32 or bf16), y: [N] int labels -> scalar mean loss."""
    N, C = x.shape
    itemsize = jnp.dtype(x.dtype).itemsize
    if tile_n is None:
        tile_n = _pick_tile_n(N, C, itemsize, num_cores)

    chunk = num_cores * tile_n
    n_pad = (-(-N // chunk)) * chunk
    num_steps = n_pad // chunk

    lbl = y.astype(jnp.int32).reshape(N, 1)
    if n_pad != N:
        x = jnp.pad(x, ((0, n_pad - N), (0, 0)))
        lbl = jnp.pad(lbl, ((0, n_pad - N), (0, 0)), constant_values=-1)

    kern = functools.partial(_apl_kernel, a_wt=float(a_wt), p_wt=float(p_wt))

    partials = pl.pallas_call(
        kern,
        out_shape=jax.ShapeDtypeStruct((num_cores, 1, 1), jnp.float32),
        grid_spec=pltpu.PrefetchScalarGridSpec(
            num_scalar_prefetch=0,
            grid=(num_cores, num_steps),
            in_specs=[
                # logits rows for (core c, step i)
                pl.BlockSpec((tile_n, C), lambda c, i: (c * num_steps + i, 0)),
                # matching int32 label rows
                pl.BlockSpec((tile_n, 1), lambda c, i: (c * num_steps + i, 0)),
            ],
            # one scalar partial per core (3-D so the last two block dims equal
            # the full array dims -> no (8,128) constraint violation)
            out_specs=pl.BlockSpec((1, 1, 1), lambda c, i: (c, 0, 0)),
            scratch_shapes=[pltpu.VMEM((tile_n, 1), jnp.float32)],
        ),
        compiler_params=pltpu.CompilerParams(
            # core axis parallel (2 TCs on v7x); batch-tile axis is a reduction
            dimension_semantics=("parallel", "arbitrary"),
            vmem_limit_bytes=32 * 1024 * 1024,
        ),
    )(x, lbl)

    # sum per-core partials and mean-reduce over the ORIGINAL batch size
    return jnp.sum(partials) / N


def _reference(x, y, num_classes, a_wt, p_wt):
    """Pure-JAX reference for the chosen (a, p) instantiation."""
    logp = jax.nn.log_softmax(x.astype(jnp.float32), axis=-1)
    probs = jnp.exp(logp)
    yoh = jax.nn.one_hot(y, num_classes, dtype=jnp.float32)
    ce = -jnp.sum(yoh * logp, axis=-1)
    mae = jnp.sum(jnp.abs(yoh - probs), axis=-1)
    return jnp.mean(a_wt * ce + p_wt * mae)


if __name__ == "__main__":
    key = jax.random.PRNGKey(0)
    kx, ky = jax.random.split(key)

    N, C = 16, 32            # small demo: batch=16, num_classes=32
    a_wt, p_wt = 0.7, 1.3    # exercise non-default weights

    x = jax.random.normal(kx, (N, C), dtype=jnp.float32)
    y = jax.random.randint(ky, (N,), 0, C, dtype=jnp.int32)

    loss = active_passive_loss(x, y, a_wt=a_wt, p_wt=p_wt)
    loss = jax.block_until_ready(loss)

    ref = jax.block_until_ready(_reference(x, y, C, a_wt, p_wt))
    assert jnp.allclose(loss, ref, rtol=1e-5, atol=1e-5), (loss, ref)

    print("KERNEL_OK")
</pallas_src>

<mosaic_0001>
module attributes {stable_mosaic.version = 11 : i64} {
  func.func @_apl_kernel(%arg0: i32, %arg1: i32, %arg2: memref<8x32xf32, #tpu.memory_space<vmem>>, %arg3: memref<8x1xi32, #tpu.memory_space<vmem>>, %arg4: memref<1x1x1xf32, #tpu.memory_space<vmem>>, %arg5: memref<8x1xf32, #tpu.memory_space<vmem>>) attributes {dimension_semantics = [#tpu.dimension_semantics<parallel>, #tpu.dimension_semantics<arbitrary>], iteration_bounds = array<i64: 2, 1>, scalar_prefetch = 0 : i64, scratch_operands = 1 : i64, tpu.core_type = #tpu.core_type<tc>, window_params = [{transform_indices = @transform_0, window_bounds = array<i64: 8, 32>}, {transform_indices = @transform_1, window_bounds = array<i64: 8, 1>}, {transform_indices = @transform_2, window_bounds = array<i64: 1, 1, 1>}]} {
    %c0_i32 = arith.constant 0 : i32
    %0 = arith.cmpi eq, %arg1, %c0_i32 : i32
    %1 = arith.extui %0 : i1 to i32
    %c0_i32_0 = arith.constant 0 : i32
    %2 = arith.cmpi ne, %1, %c0_i32_0 : i32
    scf.if %2 {
      %cst_19 = arith.constant 0.000000e+00 : f32
      %45 = vector.broadcast %cst_19 : f32 to vector<8x1xf32>
      %c0_20 = arith.constant 0 : index
      %c0_21 = arith.constant 0 : index
      %46 = vector.load %arg5[%c0_20, %c0_21] : memref<8x1xf32, #tpu.memory_space<vmem>>, vector<8x1xf32>
      tpu.vector_store %arg5[%c0_20, %c0_21], %45 {strides = array<i32>} : memref<8x1xf32, #tpu.memory_space<vmem>>, vector<8x1xf32>,
    } else {
    }
    %c0 = arith.constant 0 : index
    %c0_1 = arith.constant 0 : index
    %3 = vector.load %arg2[%c0, %c0_1] : memref<8x32xf32, #tpu.memory_space<vmem>>, vector<8x32xf32>
    %c0_2 = arith.constant 0 : index
    %c0_3 = arith.constant 0 : index
    %4 = vector.load %arg3[%c0_2, %c0_3] : memref<8x1xi32, #tpu.memory_space<vmem>>, vector<8x1xi32>
    %5 = tpu.iota {dimensions = array<i32: 1>} : vector<8x32xi32>
    %6 = vector.broadcast %4 : vector<8x1xi32> to vector<8x32xi32>
    %7 = arith.cmpi eq, %5, %6 : vector<8x32xi32>
    %cst = arith.constant dense<0xFF800000> : vector<8xf32>
    %8 = vector.multi_reduction <maximumf>, %3, %cst [1] : vector<8x32xf32> to vector<8xf32>
    %9 = vector.shape_cast %8 : vector<8xf32> to vector<8x1xf32>
    %10 = vector.broadcast %9 : vector<8x1xf32> to vector<8x32xf32>
    %11 = arith.subf %3, %10 : vector<8x32xf32>
    %12 = math.exp %11 : vector<8x32xf32>
    %cst_4 = arith.constant dense<0.000000e+00> : vector<8xf32>
    %13 = vector.multi_reduction <add>, %12, %cst_4 [1] : vector<8x32xf32> to vector<8xf32>
    %14 = vector.shape_cast %13 : vector<8xf32> to vector<8x1xf32>
    %cst_5 = arith.constant 0.000000e+00 : f32
    %15 = vector.broadcast %cst_5 : f32 to vector<8x32xf32>
    %16 = arith.select %7, %3, %15 : vector<8x32xi1>, vector<8x32xf32>
    %cst_6 = arith.constant dense<0.000000e+00> : vector<8xf32>
    %17 = vector.multi_reduction <add>, %16, %cst_6 [1] : vector<8x32xf32> to vector<8xf32>
    %18 = vector.shape_cast %17 : vector<8xf32> to vector<8x1xf32>
    %19 = arith.subf %18, %9 : vector<8x1xf32>
    %20 = math.log %14 : vector<8x1xf32>
    %21 = arith.subf %19, %20 : vector<8x1xf32>
    %cst_7 = arith.constant 0.000000e+00 : f32
    %22 = vector.broadcast %cst_7 : f32 to vector<8x1xf32>
    %23 = arith.subf %22, %21 : vector<8x1xf32>
    %24 = math.exp %21 : vector<8x1xf32>
    %cst_8 = arith.constant 1.000000e+00 : f32
    %25 = vector.broadcast %cst_8 : f32 to vector<8x1xf32>
    %26 = arith.subf %25, %24 : vector<8x1xf32>
    %cst_9 = arith.constant 2.000000e+00 : f32
    %27 = vector.broadcast %cst_9 : f32 to vector<8x1xf32>
    %28 = arith.mulf %27, %26 : vector<8x1xf32>
    %c0_i32_10 = arith.constant 0 : i32
    %29 = vector.broadcast %c0_i32_10 : i32 to vector<8x1xi32>
    %30 = arith.cmpi sge, %4, %29 : vector<8x1xi32>
    %31 = arith.extui %30 : vector<8x1xi1> to vector<8x1xi32>
    %32 = arith.sitofp %31 : vector<8x1xi32> to vector<8x1xf32>
    %c0_11 = arith.constant 0 : index
    %c0_12 = arith.constant 0 : index
    %33 = vector.load %arg5[%c0_11, %c0_12] : memref<8x1xf32, #tpu.memory_space<vmem>>, vector<8x1xf32>
    %cst_13 = arith.constant 0.699999988 : f32
    %34 = vector.broadcast %cst_13 : f32 to vector<8x1xf32>
    %35 = arith.mulf %34, %23 : vector<8x1xf32>
    %cst_14 = arith.constant 1.300000e+00 : f32
    %36 = vector.broadcast %cst_14 : f32 to vector<8x1xf32>
    %37 = arith.mulf %36, %28 : vector<8x1xf32>
    %38 = arith.addf %35, %37 : vector<8x1xf32>
    %39 = arith.mulf %32, %38 : vector<8x1xf32>
    %40 = arith.addf %33, %39 : vector<8x1xf32>
    %c0_15 = arith.constant 0 : index
    %c0_16 = arith.constant 0 : index
    %41 = vector.load %arg5[%c0_15, %c0_16] : memref<8x1xf32, #tpu.memory_space<vmem>>, vector<8x1xf32>
    tpu.vector_store %arg5[%c0_15, %c0_16], %40 {strides = array<i32>} : memref<8x1xf32, #tpu.memory_space<vmem>>, vector<8x1xf32>,
    %c0_i32_17 = arith.constant 0 : i32
    %42 = arith.cmpi eq, %arg1, %c0_i32_17 : i32
    %43 = arith.extui %42 : i1 to i32
    %c0_i32_18 = arith.constant 0 : i32
    %44 = arith.cmpi ne, %43, %c0_i32_18 : i32
    scf.if %44 {
      %c0_19 = arith.constant 0 : index
      %c0_20 = arith.constant 0 : index
      %45 = vector.load %arg5[%c0_19, %c0_20] : memref<8x1xf32, #tpu.memory_space<vmem>>, vector<8x1xf32>
      %46 = vector.shape_cast %45 : vector<8x1xf32> to vector<1x8x1xf32>
      %cst_21 = arith.constant dense<0.000000e+00> : vector<1xf32>
      %47 = vector.multi_reduction <add>, %46, %cst_21 [1, 2] : vector<1x8x1xf32> to vector<1xf32>
      %48 = vector.shape_cast %47 : vector<1xf32> to vector<1x1x1xf32>
      %49 = vector.extract %48[0, 0, 0] : f32 from vector<1x1x1xf32>
      %50 = vector.broadcast %49 : f32 to vector<1x1x1xf32>
      %c0_22 = arith.constant 0 : index
      %c0_23 = arith.constant 0 : index
      %c0_24 = arith.constant 0 : index
      %51 = vector.load %arg4[%c0_22, %c0_23, %c0_24] : memref<1x1x1xf32, #tpu.memory_space<vmem>>, vector<1x1x1xf32>
      tpu.vector_store %arg4[%c0_22, %c0_23, %c0_24], %50 {strides = array<i32>} : memref<1x1x1xf32, #tpu.memory_space<vmem>>, vector<1x1x1xf32>,
    } else {
    }
    return
  }
  func.func @transform_0(%arg0: i32, %arg1: i32) -> (i32, i32) {
    %c1_i32 = arith.constant 1 : i32
    %0 = arith.muli %arg0, %c1_i32 : i32
    %1 = arith.addi %0, %arg1 : i32
    %c0_i32 = arith.constant 0 : i32
    %c0_i32_0 = arith.constant 0 : i32
    return %1, %c0_i32 : i32, i32
  }
  func.func @transform_1(%arg0: i32, %arg1: i32) -> (i32, i32) {
    %c1_i32 = arith.constant 1 : i32
    %0 = arith.muli %arg0, %c1_i32 : i32
    %1 = arith.addi %0, %arg1 : i32
    %c0_i32 = arith.constant 0 : i32
    %c0_i32_0 = arith.constant 0 : i32
    return %1, %c0_i32 : i32, i32
  }
  func.func @transform_2(%arg0: i32, %arg1: i32) -> (i32, i32, i32) {
    %c0_i32 = arith.constant 0 : i32
    %c0_i32_0 = arith.constant 0 : i32
    %c0_i32_1 = arith.constant 0 : i32
    return %arg0, %c0_i32, %c0_i32_0 : i32, i32, i32
  }
}

</mosaic_0001>

<llo_original>
// kernel: tpu_custom_call.1
$region0: #{tpu_custom_call.1}
  #allocation0 [shape = 'u32[]', space=smem, size = 0x4, offset = 0x4, fixed_abs, tag = 'smem constant byte address 0x4 - core index']
  #allocation1 [shape = 'u32[72,128]{1,0:T(1,128)}', space=vmem, size = 0x9000, scoped, tag = 'internal scratch']
  #allocation2 [shape = 'f32[8,1]{1,0:T(8,128)}', space=vmem, size = 0x1000, scoped, tag = 'scratch operand']
  %s0 = inlined_call_operand.vmem [shape: f32[16,32], index: 0, kind: input, shape index: {}]
  %s1 = inlined_call_operand.vmem [shape: s32[16,1], index: 1, kind: input, shape index: {}]
  %s2 = inlined_call_operand.vmem [shape: f32[2,1,1], index: 2, kind: output, shape index: {}]
  %s3 = sld [smem:[#allocation0]]
  $region49: #{tpu_custom_call.1} parent=0
    _
  %s5 = ssub.s32 1, %s3
  %s6 = scalar_select 0, %s5, %s3
  loop: start=0, step=1, limit=4
  $region2: #{tpu_custom_call.1} parent=0 // loop_pre_header
    _
  $region3: #{tpu_custom_call.1} parent=0 // loop_header
    %s8 = sphi 0, %s12
    %p9 = scmp.ge.s32.totalorder %s8, 4
    %s15 = sphi 0, %s27
    %s16 = sphi 0, %s23
    %s17 = sphi 0, %s15
    %s18 = sphi 0, %s16
    %s19 = sphi 0, %s17
    %s20 = sphi 0, %s18
    %s32 = sphi 0, %s34
    %s35 = sphi 0, %s32
    %s36 = sphi 0, %s35
    %s52 = sphi 0, %s36
    %s60 = sphi 0, %s62
    %s63 = sphi 0, %s60
    %s64 = sphi 0, %s63
    %s80 = sphi 0, %s64
    %s86 = sphi 0, %s88
    %s89 = sphi 0, %s86
    %s90 = sphi 0, %s89
    %s106 = sphi 0, %s90
  $region4: #{tpu_custom_call.1} parent=0 // loop_header_branch
    %11 = sbr.rel (%p9) target = $region8
  $region5: #{tpu_custom_call.1} parent=0 // loop_body
    %s13 = ssub.s32 %s8, 1
    %s14 = ssub.s32 %s8, 2
    %s21 = sadd.s32 1, %s16
    %p22 = scmp.ge.s32.totalorder %s21, 1
    %s23 = scalar_select %p22, 0, %s21
    %s24 = sadd.s32 1, %s15
    %s25 = scalar_select %p22, %s24, %s15
    %p26 = scmp.ge.s32.totalorder %s25, 2
    %s27 = scalar_select %p26, 0, %s25
    %s28 = sadd.s32 %s15, %s16
    %s29 = sadd.s32 %s27, %s23
    %s30 = ssub.s32 %s28, %s29
    %p31 = scmp.eq.s32.totalorder %s30, 0
    %s33 = sadd.s32 %s32, 1
    %s34 = scalar_select %p31, %s32, %s33
    %p37 = pneg %p31
    %p38 = scmp.eq.s32.totalorder %s8, 1
    %p39 = por %p37, %p38
    %p40 = scmp.ne.s32.totalorder %s32, %s35
    %p41 = scmp.eq.s32.totalorder %s8, 0
    %p42 = por %p40, %p41
    %p43 = scmp.ne.s32.totalorder %s32, %s35
    %p44 = scmp.eq.s32.totalorder %s13, 1
    %p45 = por %p43, %p44
    %p46 = scmp.ne.s32.totalorder %s35, %s36
    %p47 = scmp.eq.s32.totalorder %s13, 0
    %p48 = por %p46, %p47
    %p49 = scmp.ne.s32.totalorder %s35, %s36
    %p50 = scmp.eq.s32.totalorder %s14, 1
    %p51 = por %p49, %p50
    %p53 = scmp.ne.s32.totalorder %s36, %s52
    %p54 = scmp.eq.s32.totalorder %s14, 0
    %p55 = por %p53, %p54
    %s56 = sadd.s32 %s15, %s16
    %s57 = sadd.s32 %s27, %s23
    %s58 = ssub.s32 %s56, %s57
    %p59 = scmp.eq.s32.totalorder %s58, 0
    %s61 = sadd.s32 %s60, 1
    %s62 = scalar_select %p59, %s60, %s61
    %p65 = pneg %p59
    %p66 = scmp.eq.s32.totalorder %s8, 1
    %p67 = por %p65, %p66
    %p68 = scmp.ne.s32.totalorder %s60, %s63
    %p69 = scmp.eq.s32.totalorder %s8, 0
    %p70 = por %p68, %p69
    %p71 = scmp.ne.s32.totalorder %s60, %s63
    %p72 = scmp.eq.s32.totalorder %s13, 1
    %p73 = por %p71, %p72
    %p74 = scmp.ne.s32.totalorder %s63, %s64
    %p75 = scmp.eq.s32.totalorder %s13, 0
    %p76 = por %p74, %p75
    %p77 = scmp.ne.s32.totalorder %s63, %s64
    %p78 = scmp.eq.s32.totalorder %s14, 1
    %p79 = por %p77, %p78
    %p81 = scmp.ne.s32.totalorder %s64, %s80
    %p82 = scmp.eq.s32.totalorder %s14, 0
    %p83 = por %p81, %p82
    %s84 = ssub.s32 %s15, %s27
    %p85 = scmp.eq.s32.totalorder %s84, 0
    %s87 = sadd.s32 %s86, 1
    %s88 = scalar_select %p85, %s86, %s87
    %p91 = pneg %p85
    %p92 = scmp.eq.s32.totalorder %s8, 1
    %p93 = por %p91, %p92
    %p94 = scmp.ne.s32.totalorder %s86, %s89
    %p95 = scmp.eq.s32.totalorder %s8, 0
    %p96 = por %p94, %p95
    %p97 = scmp.ne.s32.totalorder %s86, %s89
    %p98 = scmp.eq.s32.totalorder %s13, 1
    %p99 = por %p97, %p98
    %p100 = scmp.ne.s32.totalorder %s89, %s90
    %p101 = scmp.eq.s32.totalorder %s13, 0
    %p102 = por %p100, %p101
    %p103 = scmp.ne.s32.totalorder %s89, %s90
    %p104 = scmp.eq.s32.totalorder %s14, 1
    %p105 = por %p103, %p104
    %p107 = scmp.ne.s32.totalorder %s90, %s106
    %p108 = scmp.eq.s32.totalorder %s14, 0
    %p109 = por %p107, %p108
    %p110 = scmp.le.s32.totalorder 1, %s8
    %p111 = scmp.lt.s32.totalorder %s8, 3
    %p112 = pnand %p110, %p111
    %p113 = pneg %p112
    // Predicated region
    $region9: #{tpu_custom_call.1} parent=5 // pred_check
      _
    $region10: #{tpu_custom_call.1} parent=5 // pred_check_branch
      %115 = sbr.rel (%p112) target = $region12
    $region11: #{tpu_custom_call.1} parent=5 // pred_region
      %s116 = ssub.s32 %s8, 1
    $region12: #{tpu_custom_call.1} parent=5 // pred_fallthru
      _
    %p117 = scmp.lt.s32.totalorder %s8, 2
    // Predicated region
    $region13: #{tpu_custom_call.1} parent=5 // pred_check
      %p118 = pneg %p117
    $region14: #{tpu_custom_call.1} parent=5 // pred_check_branch
      %120 = sbr.rel (%p118) target = $region16
    $region15: #{tpu_custom_call.1} parent=5 // pred_region
      // Predicated region
      $region17: #{tpu_custom_call.1} parent=15 // pred_check
        %p121 = pneg %p42
      $region18: #{tpu_custom_call.1} parent=15 // pred_check_branch
        %123 = sbr.rel (%p121) target = $region20
      $region19: #{tpu_custom_call.1} parent=15 // pred_region
        %s124 = sadd.s32 %s15, %s16
        %p125 = scmp.lt.s32.totalorder %s124, 1
        %s126 = scalar_select %p125, %s124, 1
        %s127 = smul.addr %s126, 8
        %s128 = scalar_lea.vmem %s0, %s127
        %s129 = sadd.s32 %s15, %s16
      $region20: #{tpu_custom_call.1} parent=15 // pred_fallthru
        _
      // Predicated region
      $region21: #{tpu_custom_call.1} parent=15 // pred_check
        %p130 = pneg %p70
      $region22: #{tpu_custom_call.1} parent=15 // pred_check_branch
        %132 = sbr.rel (%p130) target = $region24
      $region23: #{tpu_custom_call.1} parent=15 // pred_region
        %s133 = sadd.s32 %s15, %s16
        %p134 = scmp.lt.s32.totalorder %s133, 1
        %s135 = scalar_select %p134, %s133, 1
        %s136 = smul.addr %s135, 8
        %s137 = scalar_lea.vmem %s1, %s136
        %s138 = sadd.s32 %s15, %s16
      $region24: #{tpu_custom_call.1} parent=15 // pred_fallthru
        _
    $region16: #{tpu_custom_call.1} parent=5 // pred_fallthru
      _
    %p139 = scmp.le.s32.totalorder 1, %s8
    %p140 = scmp.lt.s32.totalorder %s8, 3
    %p141 = pnand %p139, %p140
    %p142 = pneg %p141
    // Predicated region
    $region25: #{tpu_custom_call.1} parent=5 // pred_check
      _
    $region26: #{tpu_custom_call.1} parent=5 // pred_check_branch
      %144 = sbr.rel (%p141) target = $region28
    $region27: #{tpu_custom_call.1} parent=5 // pred_region
      %s145 = ssub.s32 %s8, 1
      %s146 = sadd.s32 %s17, %s18
      %p147 = scmp.lt.s32.totalorder %s146, 1
      %s148 = scalar_select %p147, %s146, 1
      %s149 = smul.addr %s148, 8
      %s150 = scalar_lea.vmem %s0, %s149
      %p151 = pneg %p48
      %p152 = pneg %p45
      %s153 = sadd.s32 %s17, %s18
      %p154 = scmp.lt.s32.totalorder %s153, 1
      %s155 = scalar_select %p154, %s153, 1
      %s156 = smul.addr %s155, 8
      %s157 = scalar_lea.vmem %s1, %s156
      %p158 = pneg %p76
      %p159 = pneg %p73
      %p160 = pneg %p102
      %p161 = pneg %p99
      %p162 = scmp.lt.s32.totalorder %s17, 1
      %s163 = scalar_select %p162, %s17, 1
      %s164 = scalar_lea.vmem %s2, %s163
      %s165 = sadd.s32 %s17, %s18
      %p166 = scmp.lt.s32.totalorder %s165, 1
      %s167 = scalar_select %p166, %s165, 1
      %s168 = smul.addr %s167, 8
      %s169 = scalar_lea.vmem %s0, %s168
      %s170 = sadd.s32 %s17, %s18
      %s171 = sadd.s32 %s17, %s18
      %p172 = scmp.lt.s32.totalorder %s171, 1
      %s173 = scalar_select %p172, %s171, 1
      %s174 = smul.addr %s173, 8
      %s175 = scalar_lea.vmem %s1, %s174
      %s176 = sadd.s32 %s17, %s18
      %p177 = scmp.lt.s32.totalorder %s17, 1
      %s178 = scalar_select %p177, %s17, 1
      %s179 = scalar_lea.vmem %s2, %s178
      %p180 = scmp.eq.s32.totalorder %s18, 0
      // Predicated region
      $region29: #{tpu_custom_call.1} parent=27 // pred_check
        %p181 = pneg %p180
      $region30: #{tpu_custom_call.1} parent=27 // pred_check_branch
        %183 = sbr.rel (%p181) target = $region32
      $region31: #{tpu_custom_call.1} parent=27 // pred_region
        %vm184 = vcmask 7168
        %185 = vst.msk [vmem:[#allocation2] sm:$0xff] %vm184, 0.0
      $region32: #{tpu_custom_call.1} parent=27 // pred_fallthru
        _
      %v186 = vld [vmem:[%s169] sm:$0xff]
      %v187 = vld [vmem:[%s175] sm:$0xff]
      %v188 = vlaneseq
      %v189 = vand.u32 %v188, 127
      %190 = vset.pattern.permute.xlu0 0
      %191 = vperm.xlu0 %190, %v187
      %v192 = vpop.permute.xlu0 %191
      %vm193 = vcmp.eq.s32.totalorder %v189, %v192
      %vm194 = vcmask 261120
      %v195 = vsel %vm194, %v186, -inf
      %196 = vmax.xlane.f32.xlu0 %v195
      %v197 = vpop.xlane.xlu0 %196
      %v198 = vsub.f32 %v186, %v197
      %v199 = vmul.f32 %v198, 1.442695
      %v200 = vpow.pop %v199
      %v201 = vsel %vm194, %v200, 0.0
      %202 = vadd.xlane.f32.xlu0 %v201
      %v203 = vpop.xlane.xlu0 %202
      %v204 = vsel %vm193, %v186, 0.0
      %v205 = vsel %vm194, %v204, 0.0
      %206 = vadd.xlane.f32.xlu0 %v205
      %v207 = vpop.xlane.xlu0 %206
      %v208 = vsub.f32 %v207, %v197
      %v209 = vlog2.pop %v203
      %v210 = vmul.f32 %v209, 0.6931472
      %v211 = vsub.f32 %v208, %v210
      %v212 = vsub.f32 0.0, %v211
      %v213 = vmul.f32 %v211, 1.442695
      %v214 = vpow.pop %v213
      %v215 = vsub.f32 1.0, %v214
      %v216 = vmul.f32 %v215, 2.0
      %vm217 = vcmp.ge.s32.totalorder %v187, 0
      %v218 = vsel %vm217, 1, 0
      %v219 = vcvt.s32.f32 %v218
      %v220 = vld [vmem:[#allocation2] sm:$0xff]
      %v221 = vmul.f32 %v212, 0.7
      %v222 = vmul.f32 %v216, 1.3
      %v223 = vadd.f32 %v221, %v222
      %v224 = vmul.f32 %v219, %v223
      %v225 = vadd.f32 %v220, %v224
      %vm226 = vcmask 7168
      %227 = vst.msk [vmem:[#allocation2] sm:$0xff] %vm226, %v225
      // Predicated region
      $region33: #{tpu_custom_call.1} parent=27 // pred_check
        %p228 = pneg %p180
      $region34: #{tpu_custom_call.1} parent=27 // pred_check_branch
        %230 = sbr.rel (%p228) target = $region36
      $region35: #{tpu_custom_call.1} parent=27 // pred_region
        %v231 = vld [vmem:[#allocation2] sm:$0xff]
        %v232 = vsel %vm226, %v231, 0.0
        %233 = vadd.xlane.f32.xlu0 %v232
        %v234 = vpop.xlane.xlu0 %233
        %v235 = vrot.slane %v234, 4
        %v236 = vadd.f32 %v234, %v235
        %v237 = vrot.slane %v236, 2
        %v238 = vadd.f32 %v236, %v237
        %v239 = vrot.slane %v238, 1
        %v240 = vadd.f32 %v238, %v239
        %s241 = vtos %v240
        %v242 = vstv %s241
        %vm243 = vcmask 0
        %244 = vst.msk [vmem:[%s179] sm:$0x1] %vm243, %v242
      $region36: #{tpu_custom_call.1} parent=27 // pred_fallthru
        _
      %p245 = scmp.lt.s32.totalorder %s17, 1
      %s246 = scalar_select %p245, %s17, 1
      %s247 = scalar_lea.vmem %s2, %s246
      // Predicated region
      $region37: #{tpu_custom_call.1} parent=27 // pred_check
        %p248 = pneg %p99
      $region38: #{tpu_custom_call.1} parent=27 // pred_check_branch
        %250 = sbr.rel (%p248) target = $region40
      $region39: #{tpu_custom_call.1} parent=27 // pred_region
        _
      $region40: #{tpu_custom_call.1} parent=27 // pred_fallthru
        _
    $region28: #{tpu_custom_call.1} parent=5 // pred_fallthru
      _
    %p251 = scmp.le.s32.totalorder 2, %s8
    // Predicated region
    $region41: #{tpu_custom_call.1} parent=5 // pred_check
      %p252 = pneg %p251
    $region42: #{tpu_custom_call.1} parent=5 // pred_check_branch
      %254 = sbr.rel (%p252) target = $region44
    $region43: #{tpu_custom_call.1} parent=5 // pred_region
      %s255 = ssub.s32 %s8, 2
      // Predicated region
      $region45: #{tpu_custom_call.1} parent=43 // pred_check
        %p256 = pneg %p105
      $region46: #{tpu_custom_call.1} parent=43 // pred_check_branch
        %258 = sbr.rel (%p256) target = $region48
      $region47: #{tpu_custom_call.1} parent=43 // pred_region
        %p259 = scmp.lt.s32.totalorder %s19, 1
        %s260 = scalar_select %p259, %s19, 1
        %s261 = scalar_lea.vmem %s2, %s260
      $region48: #{tpu_custom_call.1} parent=43 // pred_fallthru
        _
    $region44: #{tpu_custom_call.1} parent=5 // pred_fallthru
      _
  $region6: #{tpu_custom_call.1} parent=0 // loop_footer
    %s12 = sadd.s32 1, %s8
  $region7: #{tpu_custom_call.1} parent=0 // loop_footer_branch
    %7 = sbr.rel target = $region3
  $region8: #{tpu_custom_call.1} parent=0 // loop_exit
    _

</llo_original>
